<compile_context>
chip_gen: v7x
topology: tpu7x:2x2x1
jax: 0.10.0
libtpu: 0.0.40
codegen_flags: <defaults>
</compile_context>

<pallas_src>
import functools

import jax
import jax.numpy as jnp
from jax.experimental import pallas as pl
from jax.experimental.pallas import tpu as pltpu


def _round_up(x, m):
    return (x + m - 1) // m * m


# ----------------------------- kernels --------------------------------------


def _matmul_bias_kernel(x_ref, w_ref, b_ref, o_ref, acc_ref):
    # x_ref: (tm, tk)   w_ref: (tk, tn)   b_ref: (1, tn)   o_ref: (tm, tn)
    k = pl.program_id(2)
    prod = jnp.dot(x_ref[...], w_ref[...], preferred_element_type=jnp.float32)

    @pl.when(k == 0)
    def _():
        acc_ref[...] = prod            # overwrite: saves a zero-init store pass

    @pl.when(k > 0)
    def _():
        acc_ref[...] += prod

    @pl.when(k == pl.num_programs(2) - 1)
    def _():
        o_ref[...] = (acc_ref[...] + b_ref[...].astype(jnp.float32)).astype(
            o_ref.dtype
        )


def _matmul_kernel(x_ref, w_ref, o_ref, acc_ref):
    # Bias-free variant (skip_bias_add=True path).
    k = pl.program_id(2)
    prod = jnp.dot(x_ref[...], w_ref[...], preferred_element_type=jnp.float32)

    @pl.when(k == 0)
    def _():
        acc_ref[...] = prod

    @pl.when(k > 0)
    def _():
        acc_ref[...] += prod

    @pl.when(k == pl.num_programs(2) - 1)
    def _():
        o_ref[...] = acc_ref[...].astype(o_ref.dtype)


# --------------------------- weight preparation ------------------------------


def prepare_weight(weight):
    """One-time layout prep — call at parameter-init time, OUTSIDE the forward
    hot path.  weight [output_size, input_size] -> K-major [Kp, N] with K
    zero-padded to a multiple of 128 so the contraction tail stays zero."""
    N, K = weight.shape
    Kp = _round_up(K, 128)
    w_kn = weight.T                      # [K, N], K-major for the MXU
    if Kp != K:
        w_kn = jnp.pad(w_kn, ((0, Kp - K), (0, 0)))
    return w_kn


# ------------------------------ tiling --------------------------------------


def _choose_tiles(M, N, Kp, tm, tn, tk):
    # Decode / GEMV regime: whole M fits one block; weight-bandwidth bound, so
    # enlarge the weight (tk x tn) block as much as the VMEM budget allows.
    if M <= 256:
        tk = max(tk, 1024)
        tn = max(tn, 1024)
    tm_eff = tm if M > tm else M          # full-extent block is always legal
    tn_eff = tn if N > tn else N
    # tk must divide Kp exactly (Kp is a multiple of 128 -> 128 always works),
    # so the K grid axis never accumulates a garbage tail.
    tk_eff = min((tk // 128) * 128, Kp)
    while Kp % tk_eff != 0:
        tk_eff -= 128
    return tm_eff, tn_eff, tk_eff


# ------------------------------ forward --------------------------------------


@functools.partial(jax.jit, static_argnames=("tm", "tn", "tk"))
def column_parallel_linear(x_sbh, w_kn, bias=None, *, tm=512, tn=1024, tk=512):
    """Y = X @ W.T (+ b). X is [seq, batch, hidden]; w_kn is the prepared
    K-major [Kp, N] weight from prepare_weight(). Returns [seq, batch, out]."""
    S, B, K = x_sbh.shape
    Kp, N = w_kn.shape
    assert Kp == _round_up(K, 128), "w_kn must come from prepare_weight()"
    M = S * B

    x2d = x_sbh.reshape(M, K)
    if Kp != K:
        # Only when hidden is not a multiple of 128: keep the K tail zero.
        x2d = jnp.pad(x2d, ((0, 0), (0, Kp - K)))

    tm_eff, tn_eff, tk_eff = _choose_tiles(M, N, Kp, tm, tn, tk)
    grid = (pl.cdiv(M, tm_eff), pl.cdiv(N, tn_eff), Kp // tk_eff)

    x_spec = pl.BlockSpec((tm_eff, tk_eff), lambda i, j, k: (i, k))
    w_spec = pl.BlockSpec((tk_eff, tn_eff), lambda i, j, k: (k, j))
    o_spec = pl.BlockSpec((tm_eff, tn_eff), lambda i, j, k: (i, j))

    x_sz = x2d.dtype.itemsize
    w_sz = w_kn.dtype.itemsize
    o_sz = jnp.dtype(x_sbh.dtype).itemsize
    cost = pl.CostEstimate(
        flops=2 * M * N * Kp,
        transcendentals=0,
        bytes_accessed=(
            M * Kp * x_sz * grid[1]      # x streamed once per N tile
            + Kp * N * w_sz * grid[0]    # w streamed once per M tile
            + M * N * o_sz               # output written once
        ),
    )

    # Double-buffered input/output tiles + f32 accumulator; explicit limit so
    # v5e's 16 MiB default scoped VMEM does not constrain the larger tiles,
    # while staying well under v7x's 64 MiB per-TC physical VMEM.
    vmem_est = (
        2 * (tm_eff * tk_eff * x_sz + tk_eff * tn_eff * w_sz + tm_eff * tn_eff * o_sz)
        + tm_eff * tn_eff * 4
        + 2 * tn_eff * 4
    )
    cparams = pltpu.CompilerParams(
        dimension_semantics=("parallel", "parallel", "arbitrary"),
        vmem_limit_bytes=min(64 * 1024 * 1024,
                             max(32 * 1024 * 1024, (vmem_est * 3) // 2)),
    )
    scratch = [pltpu.VMEM((tm_eff, tn_eff), jnp.float32)]

    if bias is not None:
        b2d = bias.reshape(1, N)
        b_spec = pl.BlockSpec((1, tn_eff), lambda i, j, k: (0, j))
        out2d = pl.pallas_call(
            _matmul_bias_kernel,
            out_shape=jax.ShapeDtypeStruct((M, N), x_sbh.dtype),
            grid_spec=pltpu.PrefetchScalarGridSpec(
                num_scalar_prefetch=0,
                grid=grid,
                in_specs=[x_spec, w_spec, b_spec],
                out_specs=o_spec,
                scratch_shapes=scratch,
            ),
            compiler_params=cparams,
            cost_estimate=cost,
        )(x2d, w_kn, b2d)
    else:
        out2d = pl.pallas_call(
            _matmul_kernel,
            out_shape=jax.ShapeDtypeStruct((M, N), x_sbh.dtype),
            grid_spec=pltpu.PrefetchScalarGridSpec(
                num_scalar_prefetch=0,
                grid=grid,
                in_specs=[x_spec, w_spec],
                out_specs=o_spec,
                scratch_shapes=scratch,
            ),
            compiler_params=cparams,
            cost_estimate=cost,
        )(x2d, w_kn)

    return out2d.reshape(S, B, N)


# --------------------------- module-level wrappers ----------------------------


def init_params(key, input_size, output_size, dtype=jnp.float32):
    """xavier_normal_ weight (gain=1) and zero bias; matches
    _initialize_affine_weight_cpu with world_size=1 (weight == master weight)."""
    std = (2.0 / (input_size + output_size)) ** 0.5
    weight = std * jax.random.normal(key, (output_size, input_size), dtype=jnp.float32)
    weight = weight.astype(dtype)
    bias = jnp.zeros((output_size,), dtype=dtype)
    return weight, bias


def column_parallel_linear_forward(x_sbh, w_kn, bias, *, skip_bias_add=False):
    """Mirrors ColumnParallelLinear.forward: returns (output, output_bias).
    `w_kn` is the once-prepared K-major weight from prepare_weight()."""
    # TODO(synk): gather_output all-gather is a no-op at world_size == 1.
    if skip_bias_add:
        out = column_parallel_linear(x_sbh, w_kn, None)
        return out, bias
    out = column_parallel_linear(x_sbh, w_kn, bias)
    return out, None


if __name__ == "__main__":
    key = jax.random.PRNGKey(0)
    k_x, k_w = jax.random.split(key)

    seq, batch, hidden, out_size = 8, 2, 32, 64

    x = jax.random.normal(k_x, (seq, batch, hidden), dtype=jnp.float32)
    weight, bias = init_params(k_w, hidden, out_size, dtype=jnp.float32)

    # One-time weight layout prep (hoisted out of the forward hot path).
    w_kn = prepare_weight(weight)

    # fused-bias path
    out, out_bias = column_parallel_linear_forward(x, w_kn, bias)
    out = jax.block_until_ready(out)

    ref = (
        jnp.einsum("sbk,nk->sbn", x, weight, precision=jax.lax.Precision.HIGHEST)
        + bias
    )
    assert out.shape == (seq, batch, out_size)
    assert out_bias is None
    assert jnp.allclose(out, ref, atol=1e-4, rtol=1e-4)

    # skip_bias_add path (bias-free kernel, bias returned separately)
    out_nb, ret_bias = column_parallel_linear_forward(
        x, w_kn, bias, skip_bias_add=True
    )
    out_nb = jax.block_until_ready(out_nb)
    ref_nb = jnp.einsum(
        "sbk,nk->sbn", x, weight, precision=jax.lax.Precision.HIGHEST
    )
    assert ret_bias is not None
    assert jnp.allclose(out_nb, ref_nb, atol=1e-4, rtol=1e-4)

    print("KERNEL_OK")
</pallas_src>

<mosaic_0001>
module attributes {stable_mosaic.version = 11 : i64} {
  func.func @_matmul_bias_kernel(%arg0: i32, %arg1: i32, %arg2: i32, %arg3: memref<16x128xf32, #tpu.memory_space<vmem>>, %arg4: memref<128x64xf32, #tpu.memory_space<vmem>>, %arg5: memref<1x64xf32, #tpu.memory_space<vmem>>, %arg6: memref<16x64xf32, #tpu.memory_space<vmem>>, %arg7: memref<16x64xf32, #tpu.memory_space<vmem>>) attributes {dimension_semantics = [#tpu.dimension_semantics<parallel>, #tpu.dimension_semantics<parallel>, #tpu.dimension_semantics<arbitrary>], iteration_bounds = array<i64: 1, 1, 1>, scalar_prefetch = 0 : i64, scratch_operands = 1 : i64, tpu.core_type = #tpu.core_type<tc>, window_params = [{transform_indices = @transform_0, window_bounds = array<i64: 16, 128>}, {transform_indices = @transform_1, window_bounds = array<i64: 128, 64>}, {transform_indices = @transform_2, window_bounds = array<i64: 1, 64>}, {transform_indices = @transform_3, window_bounds = array<i64: 16, 64>}]} {
    %c0 = arith.constant 0 : index
    %c0_0 = arith.constant 0 : index
    %0 = vector.load %arg3[%c0, %c0_0] : memref<16x128xf32, #tpu.memory_space<vmem>>, vector<16x128xf32>
    %c0_1 = arith.constant 0 : index
    %c0_2 = arith.constant 0 : index
    %1 = vector.load %arg4[%c0_1, %c0_2] : memref<128x64xf32, #tpu.memory_space<vmem>>, vector<128x64xf32>
    %cst = arith.constant dense<0.000000e+00> : vector<16x64xf32>
    %2 = tpu.matmul %0, %1, %cst {dimension_numbers = #tpu.dot_dimension_numbers<[1], [0], [0], [1], [0, 0, 1, 1], [], []>} : vector<16x128xf32>, vector<128x64xf32>, vector<16x64xf32> -> vector<16x64xf32>
    %c0_i32 = arith.constant 0 : i32
    %3 = arith.cmpi eq, %arg2, %c0_i32 : i32
    %4 = arith.extui %3 : i1 to i32
    %c0_i32_3 = arith.constant 0 : i32
    %5 = arith.cmpi ne, %4, %c0_i32_3 : i32
    scf.if %5 {
      %c0_8 = arith.constant 0 : index
      %c0_9 = arith.constant 0 : index
      %12 = vector.load %arg7[%c0_8, %c0_9] : memref<16x64xf32, #tpu.memory_space<vmem>>, vector<16x64xf32>
      tpu.vector_store %arg7[%c0_8, %c0_9], %2 {strides = array<i32>} : memref<16x64xf32, #tpu.memory_space<vmem>>, vector<16x64xf32>,
    } else {
    }
    %c0_i32_4 = arith.constant 0 : i32
    %6 = arith.cmpi sgt, %arg2, %c0_i32_4 : i32
    %7 = arith.extui %6 : i1 to i32
    %c0_i32_5 = arith.constant 0 : i32
    %8 = arith.cmpi ne, %7, %c0_i32_5 : i32
    scf.if %8 {
      %c0_8 = arith.constant 0 : index
      %c0_9 = arith.constant 0 : index
      %12 = vector.load %arg7[%c0_8, %c0_9] : memref<16x64xf32, #tpu.memory_space<vmem>>, vector<16x64xf32>
      %13 = arith.addf %12, %2 : vector<16x64xf32>
      %c0_10 = arith.constant 0 : index
      %c0_11 = arith.constant 0 : index
      %14 = vector.load %arg7[%c0_10, %c0_11] : memref<16x64xf32, #tpu.memory_space<vmem>>, vector<16x64xf32>
      tpu.vector_store %arg7[%c0_10, %c0_11], %13 {strides = array<i32>} : memref<16x64xf32, #tpu.memory_space<vmem>>, vector<16x64xf32>,
    } else {
    }
    %c0_i32_6 = arith.constant 0 : i32
    %9 = arith.cmpi eq, %arg2, %c0_i32_6 : i32
    %10 = arith.extui %9 : i1 to i32
    %c0_i32_7 = arith.constant 0 : i32
    %11 = arith.cmpi ne, %10, %c0_i32_7 : i32
    scf.if %11 {
      %c0_8 = arith.constant 0 : index
      %c0_9 = arith.constant 0 : index
      %12 = vector.load %arg7[%c0_8, %c0_9] : memref<16x64xf32, #tpu.memory_space<vmem>>, vector<16x64xf32>
      %c0_10 = arith.constant 0 : index
      %c0_11 = arith.constant 0 : index
      %13 = vector.load %arg5[%c0_10, %c0_11] : memref<1x64xf32, #tpu.memory_space<vmem>>, vector<1x64xf32>
      %14 = vector.broadcast %13 : vector<1x64xf32> to vector<16x64xf32>
      %15 = arith.addf %12, %14 : vector<16x64xf32>
      %c0_12 = arith.constant 0 : index
      %c0_13 = arith.constant 0 : index
      %16 = vector.load %arg6[%c0_12, %c0_13] : memref<16x64xf32, #tpu.memory_space<vmem>>, vector<16x64xf32>
      tpu.vector_store %arg6[%c0_12, %c0_13], %15 {strides = array<i32>} : memref<16x64xf32, #tpu.memory_space<vmem>>, vector<16x64xf32>,
    } else {
    }
    return
  }
  func.func @transform_0(%arg0: i32, %arg1: i32, %arg2: i32) -> (i32, i32) {
    %c0_i32 = arith.constant 0 : i32
    return %arg0, %arg2 : i32, i32
  }
  func.func @transform_1(%arg0: i32, %arg1: i32, %arg2: i32) -> (i32, i32) {
    %c0_i32 = arith.constant 0 : i32
    return %arg2, %arg1 : i32, i32
  }
  func.func @transform_2(%arg0: i32, %arg1: i32, %arg2: i32) -> (i32, i32) {
    %c0_i32 = arith.constant 0 : i32
    %c0_i32_0 = arith.constant 0 : i32
    return %c0_i32, %arg1 : i32, i32
  }
  func.func @transform_3(%arg0: i32, %arg1: i32, %arg2: i32) -> (i32, i32) {
    %c0_i32 = arith.constant 0 : i32
    return %arg0, %arg1 : i32, i32
  }
}

</mosaic_0001>

<llo_original>
// kernel: column_parallel_linear.1
$region0: #{column_parallel_linear.1}
  #allocation0 [shape = 'u32[]', space=smem, size = 0x4, offset = 0x4, fixed_abs, tag = 'smem constant byte address 0x4 - core index']
  #allocation1 [shape = 'u32[144,128]{1,0:T(1,128)}', space=vmem, size = 0x12000, scoped, tag = 'internal scratch']
  #allocation2 [shape = 'f32[16,64]{1,0:T(8,128)}', space=vmem, size = 0x2000, scoped, tag = 'scratch operand']
  %s0 = inlined_call_operand.vmem [shape: f32[16,128], index: 0, kind: input, shape index: {}]
  %s1 = inlined_call_operand.vmem [shape: f32[128,64], index: 1, kind: input, shape index: {}]
  %s2 = inlined_call_operand.vmem [shape: f32[1,64], index: 2, kind: input, shape index: {}]
  %s3 = inlined_call_operand.hbm [shape: f32[16,64], index: 3, kind: output, shape index: {}]
  %s4 = sld [smem:[#allocation0]]
  $region34: #{column_parallel_linear.1} parent=0
    _
  %s6 = ssub.s32 1, %s4
  %s7 = scalar_select 0, %s6, %s4
  $region1: #{column_parallel_linear.1} parent=0
    #allocation3 [shape = 'u8[8192]{0}', space=vmem, size = 0x2000, scoped, tag = 'output window, operand 0, single buffered']
    #allocation4 [shape = 's32[1]{0}', space=sflag, size = 0x4, scoped, tag = 'scoped memory for column_parallel_linear.1']
    %8 = vsyncpa [#allocation4], 0
    // Predicated region
    $region2: #{column_parallel_linear.1} parent=1 // pred_check
      _
    $region3: #{column_parallel_linear.1} parent=1 // pred_check_branch
      %10 = sbr.rel (0) target = $region5
    $region4: #{column_parallel_linear.1} parent=1 // pred_region
      _
    $region5: #{column_parallel_linear.1} parent=1 // pred_fallthru
      _
    // Predicated region
    $region6: #{column_parallel_linear.1} parent=1 // pred_check
      _
    $region7: #{column_parallel_linear.1} parent=1 // pred_check_branch
      %12 = sbr.rel (0) target = $region9
    $region8: #{column_parallel_linear.1} parent=1 // pred_region
      _
    $region9: #{column_parallel_linear.1} parent=1 // pred_fallthru
      _
    // Predicated region
    $region10: #{column_parallel_linear.1} parent=1 // pred_check
      _
    $region11: #{column_parallel_linear.1} parent=1 // pred_check_branch
      %14 = sbr.rel (0) target = $region13
    $region12: #{column_parallel_linear.1} parent=1 // pred_region
      _
    $region13: #{column_parallel_linear.1} parent=1 // pred_fallthru
      _
    %v15 = vld [vmem:[%s0] sm:$0xff]
    %v16 = vld [vmem:[%s0 + $0x8] sm:$0xff]
    %v17 = vld [vmem:[%s1] sm:$0xff]
    %v18 = vld [vmem:[%s1 + $0x8] sm:$0xff]
    %v19 = vld [vmem:[%s1 + $0x10] sm:$0xff]
    %v20 = vld [vmem:[%s1 + $0x18] sm:$0xff]
    %v21 = vld [vmem:[%s1 + $0x20] sm:$0xff]
    %v22 = vld [vmem:[%s1 + $0x28] sm:$0xff]
    %v23 = vld [vmem:[%s1 + $0x30] sm:$0xff]
    %v24 = vld [vmem:[%s1 + $0x38] sm:$0xff]
    %v25 = vld [vmem:[%s1 + $0x40] sm:$0xff]
    %v26 = vld [vmem:[%s1 + $0x48] sm:$0xff]
    %v27 = vld [vmem:[%s1 + $0x50] sm:$0xff]
    %v28 = vld [vmem:[%s1 + $0x58] sm:$0xff]
    %v29 = vld [vmem:[%s1 + $0x60] sm:$0xff]
    %v30 = vld [vmem:[%s1 + $0x68] sm:$0xff]
    %v31 = vld [vmem:[%s1 + $0x70] sm:$0xff]
    %v32 = vld [vmem:[%s1 + $0x78] sm:$0xff]
    %33 = vmatprep.subr.mxu0 0.0
    %34 = vmatpush1.msra.mxu0 %v17
    %35 = vmatprep.subr.mxu0 0.0
    %36 = vmatpush1.msra.mxu0 %v18
    %37 = vmatprep.subr.mxu0 0.0
    %38 = vmatpush1.msra.mxu0 %v19
    %39 = vmatprep.subr.mxu0 0.0
    %40 = vmatpush1.msra.mxu0 %v20
    %41 = vmatprep.subr.mxu0 0.0
    %42 = vmatpush1.msra.mxu0 %v21
    %43 = vmatprep.subr.mxu0 0.0
    %44 = vmatpush1.msra.mxu0 %v22
    %45 = vmatprep.subr.mxu0 0.0
    %46 = vmatpush1.msra.mxu0 %v23
    %47 = vmatprep.subr.mxu0 0.0
    %48 = vmatpush1.msra.mxu0 %v24
    %49 = vmatprep.subr.mxu0 0.0
    %50 = vmatpush1.msra.mxu0 %v25
    %51 = vmatprep.subr.mxu0 0.0
    %52 = vmatpush1.msra.mxu0 %v26
    %53 = vmatprep.subr.mxu0 0.0
    %54 = vmatpush1.msra.mxu0 %v27
    %55 = vmatprep.subr.mxu0 0.0
    %56 = vmatpush1.msra.mxu0 %v28
    %57 = vmatprep.subr.mxu0 0.0
    %58 = vmatpush1.msra.mxu0 %v29
    %59 = vmatprep.subr.mxu0 0.0
    %60 = vmatpush1.msra.mxu0 %v30
    %61 = vmatprep.subr.mxu0 0.0
    %62 = vmatpush1.msra.mxu0 %v31
    %63 = vmatprep.subr.mxu0 0.0
    %64 = vmatpush1.msra.mxu0 %v32
    %65 = vmatprep.subr.mxu0 0.0
    %66 = vmatpush1.msra.mxu0 0.0
    %67 = vmatprep.subr.mxu0 0.0
    %68 = vmatpush1.msra.mxu0 0.0
    %69 = vmatprep.subr.mxu0 0.0
    %70 = vmatpush1.msra.mxu0 0.0
    %71 = vmatprep.subr.mxu0 0.0
    %72 = vmatpush1.msra.mxu0 0.0
    %73 = vmatprep.subr.mxu0 0.0
    %74 = vmatpush1.msra.mxu0 0.0
    %75 = vmatprep.subr.mxu0 0.0
    %76 = vmatpush1.msra.mxu0 0.0
    %77 = vmatprep.subr.mxu0 0.0
    %78 = vmatpush1.msra.mxu0 0.0
    %79 = vmatprep.subr.mxu0 0.0
    %80 = vmatpush1.msra.mxu0 0.0
    %81 = vmatprep.subr.mxu0 0.0
    %82 = vmatpush1.msra.mxu0 0.0
    %83 = vmatprep.subr.mxu0 0.0
    %84 = vmatpush1.msra.mxu0 0.0
    %85 = vmatprep.subr.mxu0 0.0
    %86 = vmatpush1.msra.mxu0 0.0
    %87 = vmatprep.subr.mxu0 0.0
    %88 = vmatpush1.msra.mxu0 0.0
    %89 = vmatprep.subr.mxu0 0.0
    %90 = vmatpush1.msra.mxu0 0.0
    %91 = vmatprep.subr.mxu0 0.0
    %92 = vmatpush1.msra.mxu0 0.0
    %93 = vmatprep.subr.mxu0 0.0
    %94 = vmatpush1.msra.mxu0 0.0
    %95 = vmatprep.subr.mxu0 0.0
    %96 = vmatpush1.msra.mxu0 0.0
    %97 = vmatprep.mubr.f32.mxu0 0.0
    %98 = vmatmul.mubr.f32.gmra.mrb[0].mxu0 %v15
    %v99 = vpop.f32.mrb[0].mxu0
    %v100 = vadd.f32 0.0, %v99
    %v101 = vpop.f32.mrb[0].mxu0
    %102 = vmatprep.mubr.f32.mxu0 0.0
    %103 = vmatmul.mubr.f32.gmra.mrb[0].mxu0 %v16
    %v104 = vpop.f32.mrb[0].mxu0
    %v105 = vadd.f32 0.0, %v104
    %v106 = vpop.f32.mrb[0].mxu0
    %107 = vdwg.mxu0
    %p108 = scmp.eq.s32.totalorder 0, 0
    // Predicated region
    $region14: #{column_parallel_linear.1} parent=1 // pred_check
      %p109 = pneg %p108
    $region15: #{column_parallel_linear.1} parent=1 // pred_check_branch
      %111 = sbr.rel (%p109) target = $region17
    $region16: #{column_parallel_linear.1} parent=1 // pred_region
      %vm112 = vcmask 523264
      %113 = vst.msk [vmem:[#allocation2] sm:$0xff] %vm112, %v100
      %114 = vst.msk [vmem:[#allocation2 + $0x8] sm:$0xff] %vm112, %v105
    $region17: #{column_parallel_linear.1} parent=1 // pred_fallthru
      _
    %p115 = scmp.gt.s32.totalorder 0, 0
    // Predicated region
    $region18: #{column_parallel_linear.1} parent=1 // pred_check
      %p116 = pneg %p115
    $region19: #{column_parallel_linear.1} parent=1 // pred_check_branch
      %118 = sbr.rel (%p116) target = $region21
    $region20: #{column_parallel_linear.1} parent=1 // pred_region
      %v119 = vld [vmem:[#allocation2] sm:$0xff]
      %v120 = vld [vmem:[#allocation2 + $0x8] sm:$0xff]
      %v121 = vadd.f32 %v119, %v100
      %v122 = vadd.f32 %v120, %v105
      %vm123 = vcmask 523264
      %124 = vst.msk [vmem:[#allocation2] sm:$0xff] %vm123, %v121
      %125 = vst.msk [vmem:[#allocation2 + $0x8] sm:$0xff] %vm123, %v122
    $region21: #{column_parallel_linear.1} parent=1 // pred_fallthru
      _
    // Predicated region
    $region22: #{column_parallel_linear.1} parent=1 // pred_check
      %p126 = pneg %p108
    $region23: #{column_parallel_linear.1} parent=1 // pred_check_branch
      %128 = sbr.rel (%p126) target = $region25
    $region24: #{column_parallel_linear.1} parent=1 // pred_region
      %v129 = vld [vmem:[#allocation2] sm:$0xff]
      %v130 = vld [vmem:[#allocation2 + $0x8] sm:$0xff]
      %v131 = vld [vmem:[%s2] sm:$0x1]
      %v133 = vlaneseq
      %v134 = vshrl.u32 %v133, 7
      %v135 = vsub.s32 0, %v134
      %v136 = vrot.slane %v131, %v135
      %v138 = vadd.f32 %v129, %v136
      %v139 = vadd.f32 %v130, %v136
      %vm140 = vcmask 523264
      %141 = vst.msk [vmem:[#allocation3] sm:$0xff] %vm140, %v138
      %142 = vst.msk [vmem:[#allocation3 + $0x8] sm:$0xff] %vm140, %v139
    $region25: #{column_parallel_linear.1} parent=1 // pred_fallthru
      _
    // Predicated region
    $region26: #{column_parallel_linear.1} parent=1 // pred_check
      _
    $region27: #{column_parallel_linear.1} parent=1 // pred_check_branch
      %144 = sbr.rel (0) target = $region29
    $region28: #{column_parallel_linear.1} parent=1 // pred_region
      %s146 = ssub.s32 256, 256
      %147 = vsyncadd [#allocation4], %s146
      %s148 = sshll.u32 [#allocation3], 4
      %s149 = int_to_ptr.vmem [resolvable:$true] %s148
      %154 = dma.vmem_to_hbm [thread:$0]  %s149, 256, %s3, [#allocation4], 128, 128, 8
    $region29: #{column_parallel_linear.1} parent=1 // pred_fallthru
      _
    // Predicated region
    $region30: #{column_parallel_linear.1} parent=1 // pred_check
      _
    $region31: #{column_parallel_linear.1} parent=1 // pred_check_branch
      %156 = sbr.rel (0) target = $region33
    $region32: #{column_parallel_linear.1} parent=1 // pred_region
      %157 = dma.done [#allocation4], 256
    $region33: #{column_parallel_linear.1} parent=1 // pred_fallthru
      _
    %158 = vsyncpa [#allocation4], 1

</llo_original>
